<compile_context>
chip_gen: v7x
topology: tpu7x:2x2x1
jax: 0.10.0
libtpu: 0.0.40
codegen_flags: <defaults>
</compile_context>

<pallas_src>
import functools
import math

import numpy as np

import jax
import jax.numpy as jnp
from jax.experimental import pallas as pl
from jax.experimental.pallas import tpu as pltpu

BN_EPS = 1e-5            # ocnn's module-level bn_eps default
_INV_SQRT2 = 0.7071067811865476


def _gelu_exact(v):
    return 0.5 * v * (1.0 + jax.lax.erf(v * _INV_SQRT2))


# ----------------------------------------------------------------------------
# Fused single-block path: whole problem resident in VMEM (small / medium N).
# x is read from HBM once; stats, BN and GELU happen in-register.
# ----------------------------------------------------------------------------
def _fused_kernel(x_ref, wt_ref, gamma_ref, beta_ref, o_ref, *, n_rows, eps):
    y = jnp.dot(x_ref[...], wt_ref[...], preferred_element_type=jnp.float32)
    s = jnp.sum(y, axis=0, keepdims=True)
    ssq = jnp.sum(y * y, axis=0, keepdims=True)
    mean = s * (1.0 / n_rows)
    var = jnp.maximum(ssq * (1.0 / n_rows) - mean * mean, 0.0)
    scale = gamma_ref[...] * jax.lax.rsqrt(var + eps)
    shift = beta_ref[...] - mean * scale
    yhat = y * scale + shift
    o_ref[...] = _gelu_exact(yhat).astype(o_ref.dtype)


# ----------------------------------------------------------------------------
# Tiled path, pass 1: per-channel sum / sum-of-squares of y = x @ W^T (y is NOT
# written to HBM; it is recomputed in pass 2). Grid = (chunk ['parallel'],
# step ['arbitrary']); each chunk owns its own resident accumulator block.
# ----------------------------------------------------------------------------
def _stats_kernel(x_ref, wt_ref, sum_ref, ssq_ref):
    s = pl.program_id(1)

    y = jnp.dot(x_ref[...], wt_ref[...], preferred_element_type=jnp.float32)

    @pl.when(s == 0)
    def _():
        sum_ref[...] = jnp.zeros_like(sum_ref)
        ssq_ref[...] = jnp.zeros_like(ssq_ref)

    sum_ref[...] += jnp.sum(y, axis=0, keepdims=True)
    ssq_ref[...] += jnp.sum(y * y, axis=0, keepdims=True)


# ----------------------------------------------------------------------------
# Tiled path, pass 2: recompute y = x @ W^T (cheap), apply pre-folded BN affine
# (y * scale + shift) and exact erf GELU. Fully parallel over row tiles.
# ----------------------------------------------------------------------------
def _bn_gelu_kernel(x_ref, wt_ref, scale_ref, shift_ref, o_ref):
    y = jnp.dot(x_ref[...], wt_ref[...], preferred_element_type=jnp.float32)
    yhat = y * scale_ref[...] + shift_ref[...]
    o_ref[...] = _gelu_exact(yhat).astype(o_ref.dtype)


def conv1x1_bn_gelu(x, weight, gamma, beta, *, row_tile=1024, eps=BN_EPS):
    """x: (N, Cin); weight: (Cout, Cin); gamma/beta: (Cout,). Returns (N, Cout)."""
    n, cin = x.shape
    cout, cin_w = weight.shape
    assert cin_w == cin

    # Keep matmul inputs in their native dtype if it is MXU-friendly (bf16/f32);
    # BN/GELU math stays in f32 via preferred_element_type.
    compute_dtype = jnp.bfloat16 if x.dtype == jnp.bfloat16 else jnp.float32
    itm_in = np.dtype(compute_dtype).itemsize
    itm_out = np.dtype(x.dtype).itemsize

    gamma32 = gamma.astype(jnp.float32)
    beta32 = beta.astype(jnp.float32)

    # ---- fused fast path: single kernel, x read once, no HBM intermediates ---
    fused_raw = (n * cin * itm_in            # x
                 + cin * cout * itm_in       # W^T
                 + n * cout * itm_out        # output
                 + 2 * n * cout * 4)         # f32 y / yhat temporaries
    if fused_raw <= (6 << 20):
        return pl.pallas_call(
            functools.partial(_fused_kernel, n_rows=float(n), eps=eps),
            out_shape=jax.ShapeDtypeStruct((n, cout), x.dtype),
            grid_spec=pltpu.PrefetchScalarGridSpec(
                num_scalar_prefetch=0,
                grid=(1,),
                in_specs=[
                    pl.BlockSpec((n, cin), lambda i: (0, 0)),
                    pl.BlockSpec((cin, cout), lambda i: (0, 0)),
                    pl.BlockSpec((1, cout), lambda i: (0, 0)),
                    pl.BlockSpec((1, cout), lambda i: (0, 0)),
                ],
                out_specs=pl.BlockSpec((n, cout), lambda i: (0, 0)),
            ),
            compiler_params=pltpu.CompilerParams(
                dimension_semantics=("arbitrary",),
                vmem_limit_bytes=int(min(max(4 * fused_raw, 16 << 20), 64 << 20)),
            ),
        )(x.astype(compute_dtype), weight.T.astype(compute_dtype),
          gamma32.reshape(1, cout), beta32.reshape(1, cout))

    # ---- general tiled two-pass path -----------------------------------------

    # lane-dense row packing: fold `pack` consecutive rows into one row so the
    # channel (lane) dim becomes a multiple of 128 -> full-width stores.
    pack = 1
    if cout < 128 and 128 % cout == 0 and n % (128 // cout) == 0:
        pack = 128 // cout

    np_rows = n // pack
    cin_p = cin * pack
    cout_p = cout * pack

    xp = x.reshape(np_rows, cin_p).astype(compute_dtype)
    wt = weight.T.astype(compute_dtype)                     # (Cin, Cout)
    if pack > 1:
        # block-diagonal W^T so packed rows stay independent:
        #   [x_{2r} | x_{2r+1}] @ blockdiag(Wt, Wt) = [y_{2r} | y_{2r+1}]
        wt_p = jnp.kron(jnp.eye(pack, dtype=compute_dtype), wt)   # (Cin*p, Cout*p)
    else:
        wt_p = wt

    # tiling: big row tiles (amortize ~0.35us/grid-step), sized against the
    # smallest-generation VMEM (v7x: 64 MiB physical, 32 MiB scoped default).
    tile = min(row_tile, np_rows)
    if np_rows % tile:
        tile = math.gcd(np_rows, tile)

    def vmem_need(t):
        return (2 * t * cin_p * itm_in         # x tile, double-buffered
                + 2 * cin_p * cout_p * itm_in  # W^T (resident; 2 buffers allocated)
                + 2 * t * cout_p * itm_out     # output tile (pass 2), double-buffered
                + 8 * cout_p * 4 * 8)          # stats / scale / shift (padded, tiny)

    while vmem_need(tile) > (24 << 20) and tile > 8 and tile % 2 == 0:
        tile //= 2
    vmem_limit = int(min(max(2 * vmem_need(tile), 16 << 20), 64 << 20))

    grid_rows = np_rows // tile
    # Megacore-friendly stats: split the row-tile loop into n_par independent
    # chunks, each with its own accumulator block (reduced below in the wrapper).
    n_par = 2 if (grid_rows >= 2 and grid_rows % 2 == 0) else 1
    steps = grid_rows // n_par

    # --- pass 1: per-channel statistics only (no y materialization) -----------
    psum, pssq = pl.pallas_call(
        _stats_kernel,
        out_shape=(
            jax.ShapeDtypeStruct((n_par, 1, cout_p), jnp.float32),
            jax.ShapeDtypeStruct((n_par, 1, cout_p), jnp.float32),
        ),
        grid_spec=pltpu.PrefetchScalarGridSpec(
            num_scalar_prefetch=0,
            grid=(n_par, steps),
            in_specs=[
                # NOTE: if a profile shows exposed DMA on x, add
                # pipeline_mode=pl.Buffered(3) here.
                pl.BlockSpec((tile, cin_p), lambda c, s: (c * steps + s, 0)),
                pl.BlockSpec((cin_p, cout_p), lambda c, s: (0, 0)),
            ],
            out_specs=[
                pl.BlockSpec((None, 1, cout_p), lambda c, s: (c, 0, 0)),
                pl.BlockSpec((None, 1, cout_p), lambda c, s: (c, 0, 0)),
            ],
        ),
        compiler_params=pltpu.CompilerParams(
            dimension_semantics=("parallel", "arbitrary"),
            vmem_limit_bytes=vmem_limit,
        ),
    )(xp, wt_p)

    # --- fold BN into a single per-channel (scale, shift) ---------------------
    csum = psum.reshape(n_par, cout_p).sum(axis=0).reshape(pack, cout).sum(axis=0)
    cssq = pssq.reshape(n_par, cout_p).sum(axis=0).reshape(pack, cout).sum(axis=0)
    mean = csum / n
    # E[y^2] - E[y]^2 can go slightly negative in f32 -> clamp before rsqrt.
    var = jnp.maximum(cssq / n - mean * mean, 0.0)
    scale = gamma32 * jax.lax.rsqrt(var + eps)
    shift = beta32 - mean * scale
    scale_p = jnp.tile(scale, pack).reshape(1, cout_p)
    shift_p = jnp.tile(shift, pack).reshape(1, cout_p)

    # --- pass 2: recompute matmul + fused BN affine + exact GELU --------------
    out_p = pl.pallas_call(
        _bn_gelu_kernel,
        out_shape=jax.ShapeDtypeStruct((np_rows, cout_p), x.dtype),
        grid_spec=pltpu.PrefetchScalarGridSpec(
            num_scalar_prefetch=0,
            grid=(grid_rows,),
            in_specs=[
                pl.BlockSpec((tile, cin_p), lambda i: (i, 0)),
                pl.BlockSpec((cin_p, cout_p), lambda i: (0, 0)),
                pl.BlockSpec((1, cout_p), lambda i: (0, 0)),
                pl.BlockSpec((1, cout_p), lambda i: (0, 0)),
            ],
            out_specs=pl.BlockSpec((tile, cout_p), lambda i: (i, 0)),
        ),
        compiler_params=pltpu.CompilerParams(
            dimension_semantics=("parallel",),
            vmem_limit_bytes=vmem_limit,
        ),
    )(xp, wt_p, scale_p, shift_p)

    return out_p.reshape(n, cout)


def _reference(x, weight, gamma, beta, eps=BN_EPS):
    y = jnp.dot(x, weight.T, precision=jax.lax.Precision.HIGHEST)
    mean = jnp.mean(y, axis=0, keepdims=True)
    var = jnp.mean((y - mean) ** 2, axis=0, keepdims=True)   # biased, as BN training
    yhat = (y - mean) * jax.lax.rsqrt(var + eps) * gamma[None, :] + beta[None, :]
    return 0.5 * yhat * (1.0 + jax.lax.erf(yhat / math.sqrt(2.0)))


if __name__ == "__main__":
    def run_case(n_nodes, in_channels, out_channels, seed):
        key = jax.random.PRNGKey(seed)
        kx, kw = jax.random.split(key)

        x = jax.random.normal(kx, (n_nodes, in_channels), dtype=jnp.float32)

        # Deterministic params mirroring the module's __init__ shapes:
        #   Linear weight: (out_channels, in_channels), kaiming-uniform-like range.
        bound = 1.0 / math.sqrt(in_channels)
        weight = jax.random.uniform(
            kw, (out_channels, in_channels),
            minval=-bound, maxval=bound, dtype=jnp.float32)
        #   BatchNorm1d: weight (gamma) = ones, bias (beta) = zeros.
        gamma = jnp.ones((out_channels,), dtype=jnp.float32)
        beta = jnp.zeros((out_channels,), dtype=jnp.float32)

        out = jax.block_until_ready(conv1x1_bn_gelu(x, weight, gamma, beta))
        ref = _reference(x, weight, gamma, beta)
        assert out.shape == (n_nodes, out_channels)
        assert jnp.allclose(out, ref, rtol=1e-3, atol=1e-3), "mismatch vs reference"

    # Small shape (octree node features): exercises the fused single-block path.
    run_case(256, 32, 64, seed=0)
    # Larger shape: exercises the tiled two-pass path (accumulation, lane-dense
    # row packing, megacore chunking).
    run_case(8192, 32, 64, seed=1)

    print("KERNEL_OK")
</pallas_src>

<mosaic_0001>
module attributes {stable_mosaic.version = 11 : i64} {
  func.func @_fused_kernel(%arg0: i32, %arg1: memref<256x32xf32, #tpu.memory_space<vmem>>, %arg2: memref<32x64xf32, #tpu.memory_space<vmem>>, %arg3: memref<1x64xf32, #tpu.memory_space<vmem>>, %arg4: memref<1x64xf32, #tpu.memory_space<vmem>>, %arg5: memref<256x64xf32, #tpu.memory_space<vmem>>) attributes {dimension_semantics = [#tpu.dimension_semantics<arbitrary>], iteration_bounds = array<i64: 1>, scalar_prefetch = 0 : i64, scratch_operands = 0 : i64, tpu.core_type = #tpu.core_type<tc>, window_params = [{pipeline_mode = #tpu.pipeline_mode<synchronous>, transform_indices = @transform_0, window_bounds = array<i64: 256, 32>}, {pipeline_mode = #tpu.pipeline_mode<synchronous>, transform_indices = @transform_1, window_bounds = array<i64: 32, 64>}, {pipeline_mode = #tpu.pipeline_mode<synchronous>, transform_indices = @transform_2, window_bounds = array<i64: 1, 64>}, {pipeline_mode = #tpu.pipeline_mode<synchronous>, transform_indices = @transform_3, window_bounds = array<i64: 1, 64>}, {pipeline_mode = #tpu.pipeline_mode<synchronous>, transform_indices = @transform_4, window_bounds = array<i64: 256, 64>}]} {
    %c0 = arith.constant 0 : index
    %c0_0 = arith.constant 0 : index
    %0 = vector.load %arg1[%c0, %c0_0] : memref<256x32xf32, #tpu.memory_space<vmem>>, vector<256x32xf32>
    %c0_1 = arith.constant 0 : index
    %c0_2 = arith.constant 0 : index
    %1 = vector.load %arg2[%c0_1, %c0_2] : memref<32x64xf32, #tpu.memory_space<vmem>>, vector<32x64xf32>
    %cst = arith.constant dense<0.000000e+00> : vector<256x64xf32>
    %2 = tpu.matmul %0, %1, %cst {dimension_numbers = #tpu.dot_dimension_numbers<[1], [0], [0], [1], [0, 0, 1, 1], [], []>} : vector<256x32xf32>, vector<32x64xf32>, vector<256x64xf32> -> vector<256x64xf32>
    %cst_3 = arith.constant dense<0.000000e+00> : vector<64xf32>
    %3 = vector.multi_reduction <add>, %2, %cst_3 [0] : vector<256x64xf32> to vector<64xf32>
    %4 = vector.shape_cast %3 : vector<64xf32> to vector<1x64xf32>
    %5 = arith.mulf %2, %2 : vector<256x64xf32>
    %cst_4 = arith.constant dense<0.000000e+00> : vector<64xf32>
    %6 = vector.multi_reduction <add>, %5, %cst_4 [0] : vector<256x64xf32> to vector<64xf32>
    %7 = vector.shape_cast %6 : vector<64xf32> to vector<1x64xf32>
    %cst_5 = arith.constant 3.906250e-03 : f32
    %8 = vector.broadcast %cst_5 : f32 to vector<1x64xf32>
    %9 = arith.mulf %4, %8 : vector<1x64xf32>
    %cst_6 = arith.constant 3.906250e-03 : f32
    %10 = vector.broadcast %cst_6 : f32 to vector<1x64xf32>
    %11 = arith.mulf %7, %10 : vector<1x64xf32>
    %12 = arith.mulf %9, %9 : vector<1x64xf32>
    %13 = arith.subf %11, %12 : vector<1x64xf32>
    %cst_7 = arith.constant 0.000000e+00 : f32
    %14 = vector.broadcast %cst_7 : f32 to vector<1x64xf32>
    %15 = arith.maximumf %13, %14 : vector<1x64xf32>
    %c0_8 = arith.constant 0 : index
    %c0_9 = arith.constant 0 : index
    %16 = vector.load %arg3[%c0_8, %c0_9] : memref<1x64xf32, #tpu.memory_space<vmem>>, vector<1x64xf32>
    %cst_10 = arith.constant 9.99999974E-6 : f32
    %17 = vector.broadcast %cst_10 : f32 to vector<1x64xf32>
    %18 = arith.addf %15, %17 : vector<1x64xf32>
    %19 = math.rsqrt %18 : vector<1x64xf32>
    %20 = arith.mulf %16, %19 : vector<1x64xf32>
    %c0_11 = arith.constant 0 : index
    %c0_12 = arith.constant 0 : index
    %21 = vector.load %arg4[%c0_11, %c0_12] : memref<1x64xf32, #tpu.memory_space<vmem>>, vector<1x64xf32>
    %22 = arith.mulf %9, %20 : vector<1x64xf32>
    %23 = arith.subf %21, %22 : vector<1x64xf32>
    %24 = vector.broadcast %20 : vector<1x64xf32> to vector<256x64xf32>
    %25 = arith.mulf %2, %24 : vector<256x64xf32>
    %26 = vector.broadcast %23 : vector<1x64xf32> to vector<256x64xf32>
    %27 = arith.addf %25, %26 : vector<256x64xf32>
    %cst_13 = arith.constant 5.000000e-01 : f32
    %28 = vector.broadcast %cst_13 : f32 to vector<256x64xf32>
    %29 = arith.mulf %28, %27 : vector<256x64xf32>
    %cst_14 = arith.constant 0.707106769 : f32
    %30 = vector.broadcast %cst_14 : f32 to vector<256x64xf32>
    %31 = arith.mulf %27, %30 : vector<256x64xf32>
    %32 = math.erf %31 : vector<256x64xf32>
    %cst_15 = arith.constant 1.000000e+00 : f32
    %33 = vector.broadcast %cst_15 : f32 to vector<256x64xf32>
    %34 = arith.addf %33, %32 : vector<256x64xf32>
    %35 = arith.mulf %29, %34 : vector<256x64xf32>
    %c0_16 = arith.constant 0 : index
    %c0_17 = arith.constant 0 : index
    %36 = vector.load %arg5[%c0_16, %c0_17] : memref<256x64xf32, #tpu.memory_space<vmem>>, vector<256x64xf32>
    tpu.vector_store %arg5[%c0_16, %c0_17], %35 {strides = array<i32>} : memref<256x64xf32, #tpu.memory_space<vmem>>, vector<256x64xf32>,
    return
  }
  func.func @transform_0(%arg0: i32) -> (i32, i32) {
    %c0_i32 = arith.constant 0 : i32
    %c0_i32_0 = arith.constant 0 : i32
    %c0_i32_1 = arith.constant 0 : i32
    return %c0_i32, %c0_i32_0 : i32, i32
  }
  func.func @transform_1(%arg0: i32) -> (i32, i32) {
    %c0_i32 = arith.constant 0 : i32
    %c0_i32_0 = arith.constant 0 : i32
    %c0_i32_1 = arith.constant 0 : i32
    return %c0_i32, %c0_i32_0 : i32, i32
  }
  func.func @transform_2(%arg0: i32) -> (i32, i32) {
    %c0_i32 = arith.constant 0 : i32
    %c0_i32_0 = arith.constant 0 : i32
    %c0_i32_1 = arith.constant 0 : i32
    return %c0_i32, %c0_i32_0 : i32, i32
  }
  func.func @transform_3(%arg0: i32) -> (i32, i32) {
    %c0_i32 = arith.constant 0 : i32
    %c0_i32_0 = arith.constant 0 : i32
    %c0_i32_1 = arith.constant 0 : i32
    return %c0_i32, %c0_i32_0 : i32, i32
  }
  func.func @transform_4(%arg0: i32) -> (i32, i32) {
    %c0_i32 = arith.constant 0 : i32
    %c0_i32_0 = arith.constant 0 : i32
    %c0_i32_1 = arith.constant 0 : i32
    return %c0_i32, %c0_i32_0 : i32, i32
  }
}

</mosaic_0001>

<llo_original>
// kernel: tpu_custom_call.1
$region0: #{tpu_custom_call.1}
  #allocation0 [shape = 'u32[]', space=smem, size = 0x4, offset = 0x4, fixed_abs, tag = 'smem constant byte address 0x4 - core index']
  #allocation1 [shape = 'u32[144,128]{1,0:T(1,128)}', space=vmem, size = 0x12000, scoped, tag = 'internal scratch']
  %s0 = inlined_call_operand.vmem [shape: f32[256,32], index: 0, kind: input, shape index: {}]
  %s1 = inlined_call_operand.vmem [shape: f32[32,64], index: 1, kind: input, shape index: {}]
  %s2 = inlined_call_operand.vmem [shape: f32[1,64], index: 2, kind: input, shape index: {}]
  %s3 = inlined_call_operand.vmem [shape: f32[1,64], index: 3, kind: input, shape index: {}]
  %s4 = inlined_call_operand.vmem [shape: f32[256,64], index: 4, kind: output, shape index: {}]
  %s5 = sld [smem:[#allocation0]]
  $region26: #{tpu_custom_call.1} parent=0
    _
  %s7 = ssub.s32 1, %s5
  %s8 = scalar_select 0, %s7, %s5
  // Predicated region
  $region2: #{tpu_custom_call.1} parent=0 // pred_check
    _
  $region3: #{tpu_custom_call.1} parent=0 // pred_check_branch
    %10 = sbr.rel (0) target = $region5
  $region4: #{tpu_custom_call.1} parent=0 // pred_region
    _
  $region5: #{tpu_custom_call.1} parent=0 // pred_fallthru
    _
  // Predicated region
  $region6: #{tpu_custom_call.1} parent=0 // pred_check
    _
  $region7: #{tpu_custom_call.1} parent=0 // pred_check_branch
    %12 = sbr.rel (0) target = $region9
  $region8: #{tpu_custom_call.1} parent=0 // pred_region
    _
  $region9: #{tpu_custom_call.1} parent=0 // pred_fallthru
    _
  // Predicated region
  $region10: #{tpu_custom_call.1} parent=0 // pred_check
    _
  $region11: #{tpu_custom_call.1} parent=0 // pred_check_branch
    %14 = sbr.rel (0) target = $region13
  $region12: #{tpu_custom_call.1} parent=0 // pred_region
    _
  $region13: #{tpu_custom_call.1} parent=0 // pred_fallthru
    _
  // Predicated region
  $region14: #{tpu_custom_call.1} parent=0 // pred_check
    _
  $region15: #{tpu_custom_call.1} parent=0 // pred_check_branch
    %16 = sbr.rel (0) target = $region17
  $region16: #{tpu_custom_call.1} parent=0 // pred_region
    _
  $region17: #{tpu_custom_call.1} parent=0 // pred_fallthru
    _
  %v17 = vld [vmem:[%s0] sm:$0xff]
  %v18 = vld [vmem:[%s0 + $0x8] sm:$0xff]
  %v19 = vld [vmem:[%s0 + $0x10] sm:$0xff]
  %v20 = vld [vmem:[%s0 + $0x18] sm:$0xff]
  %v21 = vld [vmem:[%s0 + $0x20] sm:$0xff]
  %v22 = vld [vmem:[%s0 + $0x28] sm:$0xff]
  %v23 = vld [vmem:[%s0 + $0x30] sm:$0xff]
  %v24 = vld [vmem:[%s0 + $0x38] sm:$0xff]
  %v25 = vld [vmem:[%s0 + $0x40] sm:$0xff]
  %v26 = vld [vmem:[%s0 + $0x48] sm:$0xff]
  %v27 = vld [vmem:[%s0 + $0x50] sm:$0xff]
  %v28 = vld [vmem:[%s0 + $0x58] sm:$0xff]
  %v29 = vld [vmem:[%s0 + $0x60] sm:$0xff]
  %v30 = vld [vmem:[%s0 + $0x68] sm:$0xff]
  %v31 = vld [vmem:[%s0 + $0x70] sm:$0xff]
  %v32 = vld [vmem:[%s0 + $0x78] sm:$0xff]
  %v33 = vld [vmem:[%s0 + $0x80] sm:$0xff]
  %v34 = vld [vmem:[%s0 + $0x88] sm:$0xff]
  %v35 = vld [vmem:[%s0 + $0x90] sm:$0xff]
  %v36 = vld [vmem:[%s0 + $0x98] sm:$0xff]
  %v37 = vld [vmem:[%s0 + $0xa0] sm:$0xff]
  %v38 = vld [vmem:[%s0 + $0xa8] sm:$0xff]
  %v39 = vld [vmem:[%s0 + $0xb0] sm:$0xff]
  %v40 = vld [vmem:[%s0 + $0xb8] sm:$0xff]
  %v41 = vld [vmem:[%s0 + $0xc0] sm:$0xff]
  %v42 = vld [vmem:[%s0 + $0xc8] sm:$0xff]
  %v43 = vld [vmem:[%s0 + $0xd0] sm:$0xff]
  %v44 = vld [vmem:[%s0 + $0xd8] sm:$0xff]
  %v45 = vld [vmem:[%s0 + $0xe0] sm:$0xff]
  %v46 = vld [vmem:[%s0 + $0xe8] sm:$0xff]
  %v47 = vld [vmem:[%s0 + $0xf0] sm:$0xff]
  %v48 = vld [vmem:[%s0 + $0xf8] sm:$0xff]
  %v49 = vld [vmem:[%s1] sm:$0xff]
  %v50 = vld [vmem:[%s1 + $0x8] sm:$0xff]
  %v51 = vld [vmem:[%s1 + $0x10] sm:$0xff]
  %v52 = vld [vmem:[%s1 + $0x18] sm:$0xff]
  %vm53 = vcmask 261120
  %v55 = vsel %vm53, %v17, 0
  %v58 = vsel %vm53, %v18, 0
  %v61 = vsel %vm53, %v19, 0
  %v64 = vsel %vm53, %v20, 0
  %v67 = vsel %vm53, %v21, 0
  %v70 = vsel %vm53, %v22, 0
  %v73 = vsel %vm53, %v23, 0
  %v76 = vsel %vm53, %v24, 0
  %v79 = vsel %vm53, %v25, 0
  %v82 = vsel %vm53, %v26, 0
  %v85 = vsel %vm53, %v27, 0
  %v88 = vsel %vm53, %v28, 0
  %v91 = vsel %vm53, %v29, 0
  %v94 = vsel %vm53, %v30, 0
  %v97 = vsel %vm53, %v31, 0
  %v100 = vsel %vm53, %v32, 0
  %v103 = vsel %vm53, %v33, 0
  %v106 = vsel %vm53, %v34, 0
  %v109 = vsel %vm53, %v35, 0
  %v112 = vsel %vm53, %v36, 0
  %v115 = vsel %vm53, %v37, 0
  %v118 = vsel %vm53, %v38, 0
  %v121 = vsel %vm53, %v39, 0
  %v124 = vsel %vm53, %v40, 0
  %v127 = vsel %vm53, %v41, 0
  %v130 = vsel %vm53, %v42, 0
  %v133 = vsel %vm53, %v43, 0
  %v136 = vsel %vm53, %v44, 0
  %v139 = vsel %vm53, %v45, 0
  %v142 = vsel %vm53, %v46, 0
  %v145 = vsel %vm53, %v47, 0
  %v148 = vsel %vm53, %v48, 0
  %150 = vmatprep.subr.mxu0 0.0
  %151 = vmatpush1.msra.mxu0 %v49
  %152 = vmatprep.subr.mxu0 0.0
  %153 = vmatpush1.msra.mxu0 %v50
  %154 = vmatprep.subr.mxu0 0.0
  %155 = vmatpush1.msra.mxu0 %v51
  %156 = vmatprep.subr.mxu0 0.0
  %157 = vmatpush1.msra.mxu0 %v52
  %158 = vmatprep.subr.mxu0 0.0
  %159 = vmatpush1.msra.mxu0 0.0
  %160 = vmatprep.subr.mxu0 0.0
  %161 = vmatpush1.msra.mxu0 0.0
  %162 = vmatprep.subr.mxu0 0.0
  %163 = vmatpush1.msra.mxu0 0.0
  %164 = vmatprep.subr.mxu0 0.0
  %165 = vmatpush1.msra.mxu0 0.0
  %166 = vmatprep.subr.mxu0 0.0
  %167 = vmatpush1.msra.mxu0 0.0
  %168 = vmatprep.subr.mxu0 0.0
  %169 = vmatpush1.msra.mxu0 0.0
  %170 = vmatprep.subr.mxu0 0.0
  %171 = vmatpush1.msra.mxu0 0.0
  %172 = vmatprep.subr.mxu0 0.0
  %173 = vmatpush1.msra.mxu0 0.0
  %174 = vmatprep.subr.mxu0 0.0
  %175 = vmatpush1.msra.mxu0 0.0
  %176 = vmatprep.subr.mxu0 0.0
  %177 = vmatpush1.msra.mxu0 0.0
  %178 = vmatprep.subr.mxu0 0.0
  %179 = vmatpush1.msra.mxu0 0.0
  %180 = vmatprep.subr.mxu0 0.0
  %181 = vmatpush1.msra.mxu0 0.0
  %182 = vmatprep.subr.mxu0 0.0
  %183 = vmatpush1.msra.mxu0 0.0
  %184 = vmatprep.subr.mxu0 0.0
  %185 = vmatpush1.msra.mxu0 0.0
  %186 = vmatprep.subr.mxu0 0.0
  %187 = vmatpush1.msra.mxu0 0.0
  %188 = vmatprep.subr.mxu0 0.0
  %189 = vmatpush1.msra.mxu0 0.0
  %190 = vmatprep.subr.mxu0 0.0
  %191 = vmatpush1.msra.mxu0 0.0
  %192 = vmatprep.subr.mxu0 0.0
  %193 = vmatpush1.msra.mxu0 0.0
  %194 = vmatprep.subr.mxu0 0.0
  %195 = vmatpush1.msra.mxu0 0.0
  %196 = vmatprep.subr.mxu0 0.0
  %197 = vmatpush1.msra.mxu0 0.0
  %198 = vmatprep.subr.mxu0 0.0
  %199 = vmatpush1.msra.mxu0 0.0
  %200 = vmatprep.subr.mxu0 0.0
  %201 = vmatpush1.msra.mxu0 0.0
  %202 = vmatprep.subr.mxu0 0.0
  %203 = vmatpush1.msra.mxu0 0.0
  %204 = vmatprep.subr.mxu0 0.0
  %205 = vmatpush1.msra.mxu0 0.0
  %206 = vmatprep.subr.mxu0 0.0
  %207 = vmatpush1.msra.mxu0 0.0
  %208 = vmatprep.subr.mxu0 0.0
  %209 = vmatpush1.msra.mxu0 0.0
  %210 = vmatprep.subr.mxu0 0.0
  %211 = vmatpush1.msra.mxu0 0.0
  %212 = vmatprep.subr.mxu0 0.0
  %213 = vmatpush1.msra.mxu0 0.0
  %214 = vmatprep.mubr.f32.mxu0 0.0
  %215 = vmatmul.mubr.f32.gmra.mrb[0].mxu0 %v55
  %v216 = vpop.f32.mrb[0].mxu0
  %v217 = vadd.f32 0.0, %v216
  %v218 = vpop.f32.mrb[0].mxu0
  %219 = vmatprep.mubr.f32.mxu0 0.0
  %220 = vmatmul.mubr.f32.gmra.mrb[0].mxu0 %v58
  %v221 = vpop.f32.mrb[0].mxu0
  %v222 = vadd.f32 0.0, %v221
  %v223 = vpop.f32.mrb[0].mxu0
  %224 = vmatprep.mubr.f32.mxu0 0.0
  %225 = vmatmul.mubr.f32.gmra.mrb[0].mxu0 %v61
  %v226 = vpop.f32.mrb[0].mxu0
  %v227 = vadd.f32 0.0, %v226
  %v228 = vpop.f32.mrb[0].mxu0
  %229 = vmatprep.mubr.f32.mxu0 0.0
  %230 = vmatmul.mubr.f32.gmra.mrb[0].mxu0 %v64
  %v231 = vpop.f32.mrb[0].mxu0
  %v232 = vadd.f32 0.0, %v231
  %v233 = vpop.f32.mrb[0].mxu0
  %234 = vmatprep.mubr.f32.mxu0 0.0
  %235 = vmatmul.mubr.f32.gmra.mrb[0].mxu0 %v67
  %v236 = vpop.f32.mrb[0].mxu0
  %v237 = vadd.f32 0.0, %v236
  %v238 = vpop.f32.mrb[0].mxu0
  %239 = vmatprep.mubr.f32.mxu0 0.0
  %240 = vmatmul.mubr.f32.gmra.mrb[0].mxu0 %v70
  %v241 = vpop.f32.mrb[0].mxu0
  %v242 = vadd.f32 0.0, %v241
  %v243 = vpop.f32.mrb[0].mxu0
  %244 = vmatprep.mubr.f32.mxu0 0.0
  %245 = vmatmul.mubr.f32.gmra.mrb[0].mxu0 %v73
  %v246 = vpop.f32.mrb[0].mxu0
  %v247 = vadd.f32 0.0, %v246
  %v248 = vpop.f32.mrb[0].mxu0
  %249 = vmatprep.mubr.f32.mxu0 0.0
  %250 = vmatmul.mubr.f32.gmra.mrb[0].mxu0 %v76
  %v251 = vpop.f32.mrb[0].mxu0
  %v252 = vadd.f32 0.0, %v251
  %v253 = vpop.f32.mrb[0].mxu0
  %254 = vmatprep.mubr.f32.mxu0 0.0
  %255 = vmatmul.mubr.f32.gmra.mrb[0].mxu0 %v79
  %v256 = vpop.f32.mrb[0].mxu0
  %v257 = vadd.f32 0.0, %v256
  %v258 = vpop.f32.mrb[0].mxu0
  %259 = vmatprep.mubr.f32.mxu0 0.0
  %260 = vmatmul.mubr.f32.gmra.mrb[0].mxu0 %v82
  %v261 = vpop.f32.mrb[0].mxu0
  %v262 = vadd.f32 0.0, %v261
  %v263 = vpop.f32.mrb[0].mxu0
  %264 = vmatprep.mubr.f32.mxu0 0.0
  %265 = vmatmul.mubr.f32.gmra.mrb[0].mxu0 %v85
  %v266 = vpop.f32.mrb[0].mxu0
  %v267 = vadd.f32 0.0, %v266
  %v268 = vpop.f32.mrb[0].mxu0
  %269 = vmatprep.mubr.f32.mxu0 0.0
  %270 = vmatmul.mubr.f32.gmra.mrb[0].mxu0 %v88
  %v271 = vpop.f32.mrb[0].mxu0
  %v272 = vadd.f32 0.0, %v271
  %v273 = vpop.f32.mrb[0].mxu0
  %274 = vmatprep.mubr.f32.mxu0 0.0
  %275 = vmatmul.mubr.f32.gmra.mrb[0].mxu0 %v91
  %v276 = vpop.f32.mrb[0].mxu0
  %v277 = vadd.f32 0.0, %v276
  %v278 = vpop.f32.mrb[0].mxu0
  %279 = vmatprep.mubr.f32.mxu0 0.0
  %280 = vmatmul.mubr.f32.gmra.mrb[0].mxu0 %v94
  %v281 = vpop.f32.mrb[0].mxu0
  %v282 = vadd.f32 0.0, %v281
  %v283 = vpop.f32.mrb[0].mxu0
  %284 = vmatprep.mubr.f32.mxu0 0.0
  %285 = vmatmul.mubr.f32.gmra.mrb[0].mxu0 %v97
  %v286 = vpop.f32.mrb[0].mxu0
  %v287 = vadd.f32 0.0, %v286
  %v288 = vpop.f32.mrb[0].mxu0
  %289 = vmatprep.mubr.f32.mxu0 0.0
  %290 = vmatmul.mubr.f32.gmra.mrb[0].mxu0 %v100
  %v291 = vpop.f32.mrb[0].mxu0
  %v292 = vadd.f32 0.0, %v291
  %v293 = vpop.f32.mrb[0].mxu0
  %294 = vmatprep.mubr.f32.mxu0 0.0
  %295 = vmatmul.mubr.f32.gmra.mrb[0].mxu0 %v103
  %v296 = vpop.f32.mrb[0].mxu0
  %v297 = vadd.f32 0.0, %v296
  %v298 = vpop.f32.mrb[0].mxu0
  %299 = vmatprep.mubr.f32.mxu0 0.0
  %300 = vmatmul.mubr.f32.gmra.mrb[0].mxu0 %v106
  %v301 = vpop.f32.mrb[0].mxu0
  %v302 = vadd.f32 0.0, %v301
  %v303 = vpop.f32.mrb[0].mxu0
  %304 = vmatprep.mubr.f32.mxu0 0.0
  %305 = vmatmul.mubr.f32.gmra.mrb[0].mxu0 %v109
  %v306 = vpop.f32.mrb[0].mxu0
  %v307 = vadd.f32 0.0, %v306
  %v308 = vpop.f32.mrb[0].mxu0
  %309 = vmatprep.mubr.f32.mxu0 0.0
  %310 = vmatmul.mubr.f32.gmra.mrb[0].mxu0 %v112
  %v311 = vpop.f32.mrb[0].mxu0
  %v312 = vadd.f32 0.0, %v311
  %v313 = vpop.f32.mrb[0].mxu0
  %314 = vmatprep.mubr.f32.mxu0 0.0
  %315 = vmatmul.mubr.f32.gmra.mrb[0].mxu0 %v115
  %v316 = vpop.f32.mrb[0].mxu0
  %v317 = vadd.f32 0.0, %v316
  %v318 = vpop.f32.mrb[0].mxu0
  %319 = vmatprep.mubr.f32.mxu0 0.0
  %320 = vmatmul.mubr.f32.gmra.mrb[0].mxu0 %v118
  %v321 = vpop.f32.mrb[0].mxu0
  %v322 = vadd.f32 0.0, %v321
  %v323 = vpop.f32.mrb[0].mxu0
  %324 = vmatprep.mubr.f32.mxu0 0.0
  %325 = vmatmul.mubr.f32.gmra.mrb[0].mxu0 %v121
  %v326 = vpop.f32.mrb[0].mxu0
  %v327 = vadd.f32 0.0, %v326
  %v328 = vpop.f32.mrb[0].mxu0
  %329 = vmatprep.mubr.f32.mxu0 0.0
  %330 = vmatmul.mubr.f32.gmra.mrb[0].mxu0 %v124
  %v331 = vpop.f32.mrb[0].mxu0
  %v332 = vadd.f32 0.0, %v331
  %v333 = vpop.f32.mrb[0].mxu0
  %334 = vmatprep.mubr.f32.mxu0 0.0
  %335 = vmatmul.mubr.f32.gmra.mrb[0].mxu0 %v127
  %v336 = vpop.f32.mrb[0].mxu0
  %v337 = vadd.f32 0.0, %v336
  %v338 = vpop.f32.mrb[0].mxu0
  %339 = vmatprep.mubr.f32.mxu0 0.0
  %340 = vmatmul.mubr.f32.gmra.mrb[0].mxu0 %v130
  %v341 = vpop.f32.mrb[0].mxu0
  %v342 = vadd.f32 0.0, %v341
  %v343 = vpop.f32.mrb[0].mxu0
  %344 = vmatprep.mubr.f32.mxu0 0.0
  %345 = vmatmul.mubr.f32.gmra.mrb[0].mxu0 %v133
  %v346 = vpop.f32.mrb[0].mxu0
  %v347 = vadd.f32 0.0, %v346
  %v348 = vpop.f32.mrb[0].mxu0
  %349 = vmatprep.mubr.f32.mxu0 0.0
  %350 = vmatmul.mubr.f32.gmra.mrb[0].mxu0 %v136
  %v351 = vpop.f32.mrb[0].mxu0
  %v352 = vadd.f32 0.0, %v351
  %v353 = vpop.f32.mrb[0].mxu0
  %354 = vmatprep.mubr.f32.mxu0 0.0
  %355 = vmatmul.mubr.f32.gmra.mrb[0].mxu0 %v139
  %v356 = vpop.f32.mrb[0].mxu0
  %v357 = vadd.f32 0.0, %v356
  %v358 = vpop.f32.mrb[0].mxu0
  %359 = vmatprep.mubr.f32.mxu0 0.0
  %360 = vmatmul.mubr.f32.gmra.mrb[0].mxu0 %v142
  %v361 = vpop.f32.mrb[0].mxu0
  %v362 = vadd.f32 0.0, %v361
  %v363 = vpop.f32.mrb[0].mxu0
  %364 = vmatprep.mubr.f32.mxu0 0.0
  %365 = vmatmul.mubr.f32.gmra.mrb[0].mxu0 %v145
  %v366 = vpop.f32.mrb[0].mxu0
  %v367 = vadd.f32 0.0, %v366
  %v368 = vpop.f32.mrb[0].mxu0
  %369 = vmatprep.mubr.f32.mxu0 0.0
  %370 = vmatmul.mubr.f32.gmra.mrb[0].mxu0 %v148
  %v371 = vpop.f32.mrb[0].mxu0
  %v372 = vadd.f32 0.0, %v371
  %v373 = vpop.f32.mrb[0].mxu0
  %374 = vdwg.mxu0
  %vm375 = vcmask 523264
  %v376 = vsel %vm375, %v217, 0.0
  %v377 = vsel %vm375, %v222, 0.0
  %v378 = vadd.f32 %v376, %v377
  %v379 = vsel %vm375, %v227, 0.0
  %v380 = vadd.f32 %v378, %v379
  %v381 = vsel %vm375, %v232, 0.0
  %v382 = vadd.f32 %v380, %v381
  %v383 = vsel %vm375, %v237, 0.0
  %v384 = vadd.f32 %v382, %v383
  %v385 = vsel %vm375, %v242, 0.0
  %v386 = vadd.f32 %v384, %v385
  %v387 = vsel %vm375, %v247, 0.0
  %v388 = vadd.f32 %v386, %v387
  %v389 = vsel %vm375, %v252, 0.0
  %v390 = vadd.f32 %v388, %v389
  %v391 = vsel %vm375, %v257, 0.0
  %v392 = vadd.f32 %v390, %v391
  %v393 = vsel %vm375, %v262, 0.0
  %v394 = vadd.f32 %v392, %v393
  %v395 = vsel %vm375, %v267, 0.0
  %v396 = vadd.f32 %v394, %v395
  %v397 = vsel %vm375, %v272, 0.0
  %v398 = vadd.f32 %v396, %v397
  %v399 = vsel %vm375, %v277, 0.0
  %v400 = vadd.f32 %v398, %v399
  %v401 = vsel %vm375, %v282, 0.0
  %v402 = vadd.f32 %v400, %v401
  %v403 = vsel %vm375, %v287, 0.0
  %v404 = vadd.f32 %v402, %v403
  %v405 = vsel %vm375, %v292, 0.0
  %v406 = vadd.f32 %v404, %v405
  %v407 = vsel %vm375, %v297, 0.0
  %v408 = vadd.f32 %v406, %v407
  %v409 = vsel %vm375, %v302, 0.0
  %v410 = vadd.f32 %v408, %v409
  %v411 = vsel %vm375, %v307, 0.0
  %v412 = vadd.f32 %v410, %v411
  %v413 = vsel %vm375, %v312, 0.0
  %v414 = vadd.f32 %v412, %v413
  %v415 = vsel %vm375, %v317, 0.0
  %v416 = vadd.f32 %v414, %v415
  %v417 = vsel %vm375, %v322, 0.0
  %v418 = vadd.f32 %v416, %v417
  %v419 = vsel %vm375, %v327, 0.0
  %v420 = vadd.f32 %v418, %v419
  %v421 = vsel %vm375, %v332, 0.0
  %v422 = vadd.f32 %v420, %v421
  %v423 = vsel %vm375, %v337, 0.0
  %v424 = vadd.f32 %v422, %v423
  %v425 = vsel %vm375, %v342, 0.0
  %v426 = vadd.f32 %v424, %v425
  %v427 = vsel %vm375, %v347, 0.0
  %v428 = vadd.f32 %v426, %v427
  %v429 = vsel %vm375, %v352, 0.0
  %v430 = vadd.f32 %v428, %v429
  %v431 = vsel %vm375, %v357, 0.0
  %v432 = vadd.f32 %v430, %v431
  %v433 = vsel %vm375, %v362, 0.0
  %v434 = vadd.f32 %v432, %v433
  %v435 = vsel %vm375, %v367, 0.0
  %v436 = vadd.f32 %v434, %v435
  %v437 = vsel %vm375, %v372, 0.0
  %v438 = vadd.f32 %v436, %v437
  %v439 = vrot.slane %v438, 4
  %v440 = vadd.f32 %v438, %v439
  %v441 = vrot.slane %v440, 2
  %v442 = vadd.f32 %v440, %v441
  %v443 = vrot.slane %v442, 1
  %v444 = vadd.f32 %v442, %v443
  %v445 = vmul.f32 %v217, %v217
  %v446 = vmul.f32 %v222, %v222
  %v447 = vmul.f32 %v227, %v227
  %v448 = vmul.f32 %v232, %v232
  %v449 = vmul.f32 %v237, %v237
  %v450 = vmul.f32 %v242, %v242
  %v451 = vmul.f32 %v247, %v247
  %v452 = vmul.f32 %v252, %v252
  %v453 = vmul.f32 %v257, %v257
  %v454 = vmul.f32 %v262, %v262
  %v455 = vmul.f32 %v267, %v267
  %v456 = vmul.f32 %v272, %v272
  %v457 = vmul.f32 %v277, %v277
  %v458 = vmul.f32 %v282, %v282
  %v459 = vmul.f32 %v287, %v287
  %v460 = vmul.f32 %v292, %v292
  %v461 = vmul.f32 %v297, %v297
  %v462 = vmul.f32 %v302, %v302
  %v463 = vmul.f32 %v307, %v307
  %v464 = vmul.f32 %v312, %v312
  %v465 = vmul.f32 %v317, %v317
  %v466 = vmul.f32 %v322, %v322
  %v467 = vmul.f32 %v327, %v327
  %v468 = vmul.f32 %v332, %v332
  %v469 = vmul.f32 %v337, %v337
  %v470 = vmul.f32 %v342, %v342
  %v471 = vmul.f32 %v347, %v347
  %v472 = vmul.f32 %v352, %v352
  %v473 = vmul.f32 %v357, %v357
  %v474 = vmul.f32 %v362, %v362
  %v475 = vmul.f32 %v367, %v367
  %v476 = vmul.f32 %v372, %v372
  %v477 = vsel %vm375, %v445, 0.0
  %v478 = vsel %vm375, %v446, 0.0
  %v479 = vadd.f32 %v477, %v478
  %v480 = vsel %vm375, %v447, 0.0
  %v481 = vadd.f32 %v479, %v480
  %v482 = vsel %vm375, %v448, 0.0
  %v483 = vadd.f32 %v481, %v482
  %v484 = vsel %vm375, %v449, 0.0
  %v485 = vadd.f32 %v483, %v484
  %v486 = vsel %vm375, %v450, 0.0
  %v487 = vadd.f32 %v485, %v486
  %v488 = vsel %vm375, %v451, 0.0
  %v489 = vadd.f32 %v487, %v488
  %v490 = vsel %vm375, %v452, 0.0
  %v491 = vadd.f32 %v489, %v490
  %v492 = vsel %vm375, %v453, 0.0
  %v493 = vadd.f32 %v491, %v492
  %v494 = vsel %vm375, %v454, 0.0
  %v495 = vadd.f32 %v493, %v494
  %v496 = vsel %vm375, %v455, 0.0
  %v497 = vadd.f32 %v495, %v496
  %v498 = vsel %vm375, %v456, 0.0
  %v499 = vadd.f32 %v497, %v498
  %v500 = vsel %vm375, %v457, 0.0
  %v501 = vadd.f32 %v499, %v500
  %v502 = vsel %vm375, %v458, 0.0
  %v503 = vadd.f32 %v501, %v502
  %v504 = vsel %vm375, %v459, 0.0
  %v505 = vadd.f32 %v503, %v504
  %v506 = vsel %vm375, %v460, 0.0
  %v507 = vadd.f32 %v505, %v506
  %v508 = vsel %vm375, %v461, 0.0
  %v509 = vadd.f32 %v507, %v508
  %v510 = vsel %vm375, %v462, 0.0
  %v511 = vadd.f32 %v509, %v510
  %v512 = vsel %vm375, %v463, 0.0
  %v513 = vadd.f32 %v511, %v512
  %v514 = vsel %vm375, %v464, 0.0
  %v515 = vadd.f32 %v513, %v514
  %v516 = vsel %vm375, %v465, 0.0
  %v517 = vadd.f32 %v515, %v516
  %v518 = vsel %vm375, %v466, 0.0
  %v519 = vadd.f32 %v517, %v518
  %v520 = vsel %vm375, %v467, 0.0
  %v521 = vadd.f32 %v519, %v520
  %v522 = vsel %vm375, %v468, 0.0
  %v523 = vadd.f32 %v521, %v522
  %v524 = vsel %vm375, %v469, 0.0
  %v525 = vadd.f32 %v523, %v524
  %v526 = vsel %vm375, %v470, 0.0
  %v527 = vadd.f32 %v525, %v526
  %v528 = vsel %vm375, %v471, 0.0
  %v529 = vadd.f32 %v527, %v528
  %v530 = vsel %vm375, %v472, 0.0
  %v531 = vadd.f32 %v529, %v530
  %v532 = vsel %vm375, %v473, 0.0
  %v533 = vadd.f32 %v531, %v532
  %v534 = vsel %vm375, %v474, 0.0
  %v535 = vadd.f32 %v533, %v534
  %v536 = vsel %vm375, %v475, 0.0
  %v537 = vadd.f32 %v535, %v536
  %v538 = vsel %vm375, %v476, 0.0
  %v539 = vadd.f32 %v537, %v538
  %v540 = vrot.slane %v539, 4
  %v541 = vadd.f32 %v539, %v540
  %v542 = vrot.slane %v541, 2
  %v543 = vadd.f32 %v541, %v542
  %v544 = vrot.slane %v543, 1
  %v545 = vadd.f32 %v543, %v544
  %v546 = vmul.f32 %v444, 0.00390625
  %v547 = vmul.f32 %v545, 0.00390625
  %v548 = vmul.f32 %v546, %v546
  %v549 = vsub.f32 %v547, %v548
  %v550 = vmax.f32 %v549, 0.0
  %v551 = vld [vmem:[%s2] sm:$0x1]
  %v552 = vadd.f32 %v550, 1e-05
  %v553 = vrsqrt.pop %v552
  %v554 = vmul.f32 %v551, %v553
  %v555 = vld [vmem:[%s3] sm:$0x1]
  %v556 = vmul.f32 %v546, %v554
  %v557 = vsub.f32 %v555, %v556
  %v559 = vlaneseq
  %v560 = vshrl.u32 %v559, 7
  %v561 = vsub.s32 0, %v560
  %v562 = vrot.slane %v554, %v561
  %v564 = vmul.f32 %v217, %v562
  %v565 = vmul.f32 %v222, %v562
  %v566 = vmul.f32 %v227, %v562
  %v567 = vmul.f32 %v232, %v562
  %v568 = vmul.f32 %v237, %v562
  %v569 = vmul.f32 %v242, %v562
  %v570 = vmul.f32 %v247, %v562
  %v571 = vmul.f32 %v252, %v562
  %v572 = vmul.f32 %v257, %v562
  %v573 = vmul.f32 %v262, %v562
  %v574 = vmul.f32 %v267, %v562
  %v575 = vmul.f32 %v272, %v562
  %v576 = vmul.f32 %v277, %v562
  %v577 = vmul.f32 %v282, %v562
  %v578 = vmul.f32 %v287, %v562
  %v579 = vmul.f32 %v292, %v562
  %v580 = vmul.f32 %v297, %v562
  %v581 = vmul.f32 %v302, %v562
  %v582 = vmul.f32 %v307, %v562
  %v583 = vmul.f32 %v312, %v562
  %v584 = vmul.f32 %v317, %v562
  %v585 = vmul.f32 %v322, %v562
  %v586 = vmul.f32 %v327, %v562
  %v587 = vmul.f32 %v332, %v562
  %v588 = vmul.f32 %v337, %v562
  %v589 = vmul.f32 %v342, %v562
  %v590 = vmul.f32 %v347, %v562
  %v591 = vmul.f32 %v352, %v562
  %v592 = vmul.f32 %v357, %v562
  %v593 = vmul.f32 %v362, %v562
  %v594 = vmul.f32 %v367, %v562
  %v595 = vmul.f32 %v372, %v562
  %v597 = vlaneseq
  %v598 = vshrl.u32 %v597, 7
  %v599 = vsub.s32 0, %v598
  %v600 = vrot.slane %v557, %v599
  %v602 = vadd.f32 %v564, %v600
  %v603 = vadd.f32 %v565, %v600
  %v604 = vadd.f32 %v566, %v600
  %v605 = vadd.f32 %v567, %v600
  %v606 = vadd.f32 %v568, %v600
  %v607 = vadd.f32 %v569, %v600
  %v608 = vadd.f32 %v570, %v600
  %v609 = vadd.f32 %v571, %v600
  %v610 = vadd.f32 %v572, %v600
  %v611 = vadd.f32 %v573, %v600
  %v612 = vadd.f32 %v574, %v600
  %v613 = vadd.f32 %v575, %v600
  %v614 = vadd.f32 %v576, %v600
  %v615 = vadd.f32 %v577, %v600
  %v616 = vadd.f32 %v578, %v600
  %v617 = vadd.f32 %v579, %v600
  %v618 = vadd.f32 %v580, %v600
  %v619 = vadd.f32 %v581, %v600
  %v620 = vadd.f32 %v582, %v600
  %v621 = vadd.f32 %v583, %v600
  %v622 = vadd.f32 %v584, %v600
  %v623 = vadd.f32 %v585, %v600
  %v624 = vadd.f32 %v586, %v600
  %v625 = vadd.f32 %v587, %v600
  %v626 = vadd.f32 %v588, %v600
  %v627 = vadd.f32 %v589, %v600
  %v628 = vadd.f32 %v590, %v600
  %v629 = vadd.f32 %v591, %v600
  %v630 = vadd.f32 %v592, %v600
  %v631 = vadd.f32 %v593, %v600
  %v632 = vadd.f32 %v594, %v600
  %v633 = vadd.f32 %v595, %v600
  %v634 = vmul.f32 %v602, 0.5
  %v635 = vmul.f32 %v603, 0.5
  %v636 = vmul.f32 %v604, 0.5
  %v637 = vmul.f32 %v605, 0.5
  %v638 = vmul.f32 %v606, 0.5
  %v639 = vmul.f32 %v607, 0.5
  %v640 = vmul.f32 %v608, 0.5
  %v641 = vmul.f32 %v609, 0.5
  %v642 = vmul.f32 %v610, 0.5
  %v643 = vmul.f32 %v611, 0.5
  %v644 = vmul.f32 %v612, 0.5
  %v645 = vmul.f32 %v613, 0.5
  %v646 = vmul.f32 %v614, 0.5
  %v647 = vmul.f32 %v615, 0.5
  %v648 = vmul.f32 %v616, 0.5
  %v649 = vmul.f32 %v617, 0.5
  %v650 = vmul.f32 %v618, 0.5
  %v651 = vmul.f32 %v619, 0.5
  %v652 = vmul.f32 %v620, 0.5
  %v653 = vmul.f32 %v621, 0.5
  %v654 = vmul.f32 %v622, 0.5
  %v655 = vmul.f32 %v623, 0.5
  %v656 = vmul.f32 %v624, 0.5
  %v657 = vmul.f32 %v625, 0.5
  %v658 = vmul.f32 %v626, 0.5
  %v659 = vmul.f32 %v627, 0.5
  %v660 = vmul.f32 %v628, 0.5
  %v661 = vmul.f32 %v629, 0.5
  %v662 = vmul.f32 %v630, 0.5
  %v663 = vmul.f32 %v631, 0.5
  %v664 = vmul.f32 %v632, 0.5
  %v665 = vmul.f32 %v633, 0.5
  %v666 = vmul.f32 %v602, 0.70710677
  %v667 = vmul.f32 %v603, 0.70710677
  %v668 = vmul.f32 %v604, 0.70710677
  %v669 = vmul.f32 %v605, 0.70710677
  %v670 = vmul.f32 %v606, 0.70710677
  %v671 = vmul.f32 %v607, 0.70710677
  %v672 = vmul.f32 %v608, 0.70710677
  %v673 = vmul.f32 %v609, 0.70710677
  %v674 = vmul.f32 %v610, 0.70710677
  %v675 = vmul.f32 %v611, 0.70710677
  %v676 = vmul.f32 %v612, 0.70710677
  %v677 = vmul.f32 %v613, 0.70710677
  %v678 = vmul.f32 %v614, 0.70710677
  %v679 = vmul.f32 %v615, 0.70710677
  %v680 = vmul.f32 %v616, 0.70710677
  %v681 = vmul.f32 %v617, 0.70710677
  %v682 = vmul.f32 %v618, 0.70710677
  %v683 = vmul.f32 %v619, 0.70710677
  %v684 = vmul.f32 %v620, 0.70710677
  %v685 = vmul.f32 %v621, 0.70710677
  %v686 = vmul.f32 %v622, 0.70710677
  %v687 = vmul.f32 %v623, 0.70710677
  %v688 = vmul.f32 %v624, 0.70710677
  %v689 = vmul.f32 %v625, 0.70710677
  %v690 = vmul.f32 %v626, 0.70710677
  %v691 = vmul.f32 %v627, 0.70710677
  %v692 = vmul.f32 %v628, 0.70710677
  %v693 = vmul.f32 %v629, 0.70710677
  %v694 = vmul.f32 %v630, 0.70710677
  %v695 = vmul.f32 %v631, 0.70710677
  %v696 = vmul.f32 %v632, 0.70710677
  %v697 = vmul.f32 %v633, 0.70710677
  %v698 = verf.f32.pop %v666
  %v699 = verf.f32.pop %v667
  %v700 = verf.f32.pop %v668
  %v701 = verf.f32.pop %v669
  %v702 = verf.f32.pop %v670
  %v703 = verf.f32.pop %v671
  %v704 = verf.f32.pop %v672
  %v705 = verf.f32.pop %v673
  %v706 = verf.f32.pop %v674
  %v707 = verf.f32.pop %v675
  %v708 = verf.f32.pop %v676
  %v709 = verf.f32.pop %v677
  %v710 = verf.f32.pop %v678
  %v711 = verf.f32.pop %v679
  %v712 = verf.f32.pop %v680
  %v713 = verf.f32.pop %v681
  %v714 = verf.f32.pop %v682
  %v715 = verf.f32.pop %v683
  %v716 = verf.f32.pop %v684
  %v717 = verf.f32.pop %v685
  %v718 = verf.f32.pop %v686
  %v719 = verf.f32.pop %v687
  %v720 = verf.f32.pop %v688
  %v721 = verf.f32.pop %v689
  %v722 = verf.f32.pop %v690
  %v723 = verf.f32.pop %v691
  %v724 = verf.f32.pop %v692
  %v725 = verf.f32.pop %v693
  %v726 = verf.f32.pop %v694
  %v727 = verf.f32.pop %v695
  %v728 = verf.f32.pop %v696
  %v729 = verf.f32.pop %v697
  %v730 = vadd.f32 %v698, 1.0
  %v731 = vadd.f32 %v699, 1.0
  %v732 = vadd.f32 %v700, 1.0
  %v733 = vadd.f32 %v701, 1.0
  %v734 = vadd.f32 %v702, 1.0
  %v735 = vadd.f32 %v703, 1.0
  %v736 = vadd.f32 %v704, 1.0
  %v737 = vadd.f32 %v705, 1.0
  %v738 = vadd.f32 %v706, 1.0
  %v739 = vadd.f32 %v707, 1.0
  %v740 = vadd.f32 %v708, 1.0
  %v741 = vadd.f32 %v709, 1.0
  %v742 = vadd.f32 %v710, 1.0
  %v743 = vadd.f32 %v711, 1.0
  %v744 = vadd.f32 %v712, 1.0
  %v745 = vadd.f32 %v713, 1.0
  %v746 = vadd.f32 %v714, 1.0
  %v747 = vadd.f32 %v715, 1.0
  %v748 = vadd.f32 %v716, 1.0
  %v749 = vadd.f32 %v717, 1.0
  %v750 = vadd.f32 %v718, 1.0
  %v751 = vadd.f32 %v719, 1.0
  %v752 = vadd.f32 %v720, 1.0
  %v753 = vadd.f32 %v721, 1.0
  %v754 = vadd.f32 %v722, 1.0
  %v755 = vadd.f32 %v723, 1.0
  %v756 = vadd.f32 %v724, 1.0
  %v757 = vadd.f32 %v725, 1.0
  %v758 = vadd.f32 %v726, 1.0
  %v759 = vadd.f32 %v727, 1.0
  %v760 = vadd.f32 %v728, 1.0
  %v761 = vadd.f32 %v729, 1.0
  %v762 = vmul.f32 %v634, %v730
  %v763 = vmul.f32 %v635, %v731
  %v764 = vmul.f32 %v636, %v732
  %v765 = vmul.f32 %v637, %v733
  %v766 = vmul.f32 %v638, %v734
  %v767 = vmul.f32 %v639, %v735
  %v768 = vmul.f32 %v640, %v736
  %v769 = vmul.f32 %v641, %v737
  %v770 = vmul.f32 %v642, %v738
  %v771 = vmul.f32 %v643, %v739
  %v772 = vmul.f32 %v644, %v740
  %v773 = vmul.f32 %v645, %v741
  %v774 = vmul.f32 %v646, %v742
  %v775 = vmul.f32 %v647, %v743
  %v776 = vmul.f32 %v648, %v744
  %v777 = vmul.f32 %v649, %v745
  %v778 = vmul.f32 %v650, %v746
  %v779 = vmul.f32 %v651, %v747
  %v780 = vmul.f32 %v652, %v748
  %v781 = vmul.f32 %v653, %v749
  %v782 = vmul.f32 %v654, %v750
  %v783 = vmul.f32 %v655, %v751
  %v784 = vmul.f32 %v656, %v752
  %v785 = vmul.f32 %v657, %v753
  %v786 = vmul.f32 %v658, %v754
  %v787 = vmul.f32 %v659, %v755
  %v788 = vmul.f32 %v660, %v756
  %v789 = vmul.f32 %v661, %v757
  %v790 = vmul.f32 %v662, %v758
  %v791 = vmul.f32 %v663, %v759
  %v792 = vmul.f32 %v664, %v760
  %v793 = vmul.f32 %v665, %v761
  %794 = vst.msk [vmem:[%s4] sm:$0xff] %vm375, %v762
  %795 = vst.msk [vmem:[%s4 + $0x8] sm:$0xff] %vm375, %v763
  %796 = vst.msk [vmem:[%s4 + $0x10] sm:$0xff] %vm375, %v764
  %797 = vst.msk [vmem:[%s4 + $0x18] sm:$0xff] %vm375, %v765
  %798 = vst.msk [vmem:[%s4 + $0x20] sm:$0xff] %vm375, %v766
  %799 = vst.msk [vmem:[%s4 + $0x28] sm:$0xff] %vm375, %v767
  %800 = vst.msk [vmem:[%s4 + $0x30] sm:$0xff] %vm375, %v768
  %801 = vst.msk [vmem:[%s4 + $0x38] sm:$0xff] %vm375, %v769
  %802 = vst.msk [vmem:[%s4 + $0x40] sm:$0xff] %vm375, %v770
  %803 = vst.msk [vmem:[%s4 + $0x48] sm:$0xff] %vm375, %v771
  %804 = vst.msk [vmem:[%s4 + $0x50] sm:$0xff] %vm375, %v772
  %805 = vst.msk [vmem:[%s4 + $0x58] sm:$0xff] %vm375, %v773
  %806 = vst.msk [vmem:[%s4 + $0x60] sm:$0xff] %vm375, %v774
  %807 = vst.msk [vmem:[%s4 + $0x68] sm:$0xff] %vm375, %v775
  %808 = vst.msk [vmem:[%s4 + $0x70] sm:$0xff] %vm375, %v776
  %809 = vst.msk [vmem:[%s4 + $0x78] sm:$0xff] %vm375, %v777
  %810 = vst.msk [vmem:[%s4 + $0x80] sm:$0xff] %vm375, %v778
  %811 = vst.msk [vmem:[%s4 + $0x88] sm:$0xff] %vm375, %v779
  %812 = vst.msk [vmem:[%s4 + $0x90] sm:$0xff] %vm375, %v780
  %813 = vst.msk [vmem:[%s4 + $0x98] sm:$0xff] %vm375, %v781
  %814 = vst.msk [vmem:[%s4 + $0xa0] sm:$0xff] %vm375, %v782
  %815 = vst.msk [vmem:[%s4 + $0xa8] sm:$0xff] %vm375, %v783
  %816 = vst.msk [vmem:[%s4 + $0xb0] sm:$0xff] %vm375, %v784
  %817 = vst.msk [vmem:[%s4 + $0xb8] sm:$0xff] %vm375, %v785
  %818 = vst.msk [vmem:[%s4 + $0xc0] sm:$0xff] %vm375, %v786
  %819 = vst.msk [vmem:[%s4 + $0xc8] sm:$0xff] %vm375, %v787
  %820 = vst.msk [vmem:[%s4 + $0xd0] sm:$0xff] %vm375, %v788
  %821 = vst.msk [vmem:[%s4 + $0xd8] sm:$0xff] %vm375, %v789
  %822 = vst.msk [vmem:[%s4 + $0xe0] sm:$0xff] %vm375, %v790
  %823 = vst.msk [vmem:[%s4 + $0xe8] sm:$0xff] %vm375, %v791
  %824 = vst.msk [vmem:[%s4 + $0xf0] sm:$0xff] %vm375, %v792
  %825 = vst.msk [vmem:[%s4 + $0xf8] sm:$0xff] %vm375, %v793
  // Predicated region
  $region18: #{tpu_custom_call.1} parent=0 // pred_check
    _
  $region19: #{tpu_custom_call.1} parent=0 // pred_check_branch
    %827 = sbr.rel (0) target = $region21
  $region20: #{tpu_custom_call.1} parent=0 // pred_region
    _
  $region21: #{tpu_custom_call.1} parent=0 // pred_fallthru
    _
  // Predicated region
  $region22: #{tpu_custom_call.1} parent=0 // pred_check
    _
  $region23: #{tpu_custom_call.1} parent=0 // pred_check_branch
    %829 = sbr.rel (0) target = $region25
  $region24: #{tpu_custom_call.1} parent=0 // pred_region
    _
  $region25: #{tpu_custom_call.1} parent=0 // pred_fallthru
    _

</llo_original>
